<compile_context>
chip_gen: v5e
topology: v5e:2x2
jax: 0.10.0
libtpu: 0.0.40
codegen_flags: <defaults>
</compile_context>

<pallas_src>
import jax
import jax.numpy as jnp
import numpy as np
from jax.experimental import pallas as pl
from jax.experimental.pallas import tpu as pltpu

# ----------------------------- hyper-parameters ------------------------------
NUM_ENT   = 256                      # p.num_ent
NUM_REL   = 5                        # p.num_rel  (2*num_rel relation embeds)
NUM_REL2  = 2 * NUM_REL              # 10
EMBED_DIM = 32                       # p.embed_dim == p.init_dim == p.gcn_dim
NUM_FILT  = 8                        # p.num_filt
KER_SZ    = 3                        # p.ker_sz
BATCH     = 4                        # number of (sub, rel) queries
FLAT_W    = EMBED_DIM - KER_SZ + 1   # flat_sz_w = 30
FLAT_SZ   = NUM_FILT * FLAT_W        # 240
FLAT_PAD  = 256                      # FLAT_SZ padded to a multiple of 128 lanes
BN_EPS    = 1e-5


# ------------------------------ Pallas kernel ---------------------------------
def hran_convd_kernel(sub_ref, rel_ref, ent_ref, reltab_ref, ent_t_ref,
                      w1s_ref, w1r_ref, b1_ref, w2_ref, b2_ref, o_ref):
    """Fused: embedding gather -> bn0+conv+bn1 (folded into W1*/b1) -> relu ->
    fc+bn2 (folded into W2/b2) -> relu -> scores vs all entities -> sigmoid."""
    # ---- fused embedding gather: one-hot(indices) @ table on the MXU ----
    sub_idx = sub_ref[...]                                     # (B, 1) int32
    rel_idx = rel_ref[...]                                     # (B, 1) int32
    ent_ids = jax.lax.broadcasted_iota(jnp.int32, (BATCH, NUM_ENT), 1)
    rel_ids = jax.lax.broadcasted_iota(jnp.int32, (BATCH, NUM_REL2), 1)
    onehot_sub = (ent_ids == sub_idx).astype(jnp.float32)      # (B, NUM_ENT)
    onehot_rel = (rel_ids == rel_idx).astype(jnp.float32)      # (B, 2*NUM_REL)
    sub_emb = jnp.dot(onehot_sub, ent_ref[...],
                      preferred_element_type=jnp.float32)      # (B, D)
    rel_emb = jnp.dot(onehot_rel, reltab_ref[...],
                      preferred_element_type=jnp.float32)      # (B, D)

    # ---- bn0 + Conv1d (Toeplitz/unfold matmul) + bn1, scales folded ----
    # W1 is split into the sub-channel and rel-channel halves so no lane
    # concatenation of [sub_emb | rel_emb] is needed in-kernel.
    h = (jnp.dot(sub_emb, w1s_ref[...], preferred_element_type=jnp.float32)
         + jnp.dot(rel_emb, w1r_ref[...], preferred_element_type=jnp.float32)
         + b1_ref[...])
    h = jnp.maximum(h, 0.0)                                    # relu after bn1

    # ---- fc + bn2 (folded) + relu ----
    feat = jnp.dot(h, w2_ref[...],
                   preferred_element_type=jnp.float32) + b2_ref[...]
    feat = jnp.maximum(feat, 0.0)                              # relu after bn2

    # ---- scores vs all entities: ent_T pre-transposed, no XLU relayout ----
    scores = jnp.dot(feat, ent_t_ref[...],
                     preferred_element_type=jnp.float32)       # (B, NUM_ENT)
    o_ref[...] = jax.nn.sigmoid(scores)


# ----------------------- one-time parameter preparation -----------------------
def prepare_params(conv_w, conv_b, fc_w, fc_b):
    """Fold BN eval scales and lower Conv1d to an unfold (Toeplitz) matmul.

    Returns (W1s, W1r, b1, W2, b2) as f32 jnp arrays:
      W1s: (EMBED_DIM, FLAT_PAD)   sub-channel half, hidden col = w*NUM_FILT+f
      W1r: (EMBED_DIM, FLAT_PAD)   rel-channel half
      b1 : (1, FLAT_PAD)
      W2 : (FLAT_PAD, EMBED_DIM)
      b2 : (1, EMBED_DIM)
    """
    s = np.float32(1.0 / np.sqrt(1.0 + BN_EPS))   # BN eval: mean=0, var=1
    conv_w = np.asarray(conv_w, np.float32)       # (F, 2, K)
    conv_b = np.asarray(conv_b, np.float32)       # (F,)
    fc_w = np.asarray(fc_w, np.float32)           # (D, FLAT_SZ), idx f*FLAT_W+w
    fc_b = np.asarray(fc_b, np.float32)           # (D,)

    # Unfold weight: out[b, w*F + f] = sum_{c,k} x[b, c, w+k] * conv_w[f, c, k]
    W1 = np.zeros((2, EMBED_DIM, FLAT_PAD), np.float32)
    for c in range(2):
        for k in range(KER_SZ):
            for w in range(FLAT_W):
                W1[c, w + k, w * NUM_FILT:(w + 1) * NUM_FILT] = conv_w[:, c, k]
    W1 *= s * s                                   # fold bn0 and bn1 scales
    b1 = np.zeros((1, FLAT_PAD), np.float32)
    b1[0, :FLAT_SZ] = np.tile(conv_b, FLAT_W) * s  # conv bias through bn1

    # fc weight: PyTorch flat index f*FLAT_W + w  ->  row index w*NUM_FILT + f
    W2 = np.zeros((FLAT_PAD, EMBED_DIM), np.float32)
    W2[:FLAT_SZ, :] = np.transpose(
        fc_w.reshape(EMBED_DIM, NUM_FILT, FLAT_W), (2, 1, 0)
    ).reshape(FLAT_SZ, EMBED_DIM)
    W2 *= s                                       # fold bn2 scale
    b2 = (fc_b * s).reshape(1, EMBED_DIM)

    # TODO(synk): for bf16 weights / entity table (v5e throughput, HBM BW when
    # NUM_ENT scales) cast here and relax the 1e-5 check; kept f32 to match ref.
    return (jnp.asarray(W1[0]), jnp.asarray(W1[1]),
            jnp.asarray(b1), jnp.asarray(W2), jnp.asarray(b2))


# ------------------------------ JAX wrapper -----------------------------------
@jax.jit
def hran_convd_forward(sub, rel, init_embed, init_rel, W1s, W1r, b1, W2, b2):
    # forward_base (no_enc branch, eval mode): x = init_embed, r = init_rel
    all_ent = init_embed                                  # (NUM_ENT, D) gather src
    ent_t = all_ent.T                                     # (D, NUM_ENT) for scores
    sub_idx = sub.reshape(BATCH, 1).astype(jnp.int32)     # raw indices -> kernel
    rel_idx = rel.reshape(BATCH, 1).astype(jnp.int32)

    flops = 2 * BATCH * (NUM_ENT * EMBED_DIM            # sub gather matmul
                         + NUM_REL2 * EMBED_DIM          # rel gather matmul
                         + 2 * EMBED_DIM * FLAT_PAD      # conv-as-matmul (2 halves)
                         + FLAT_PAD * EMBED_DIM          # fc
                         + EMBED_DIM * NUM_ENT)          # scores
    bytes_accessed = 4 * (2 * BATCH
                          + 2 * NUM_ENT * EMBED_DIM      # ent + ent_t
                          + NUM_REL2 * EMBED_DIM
                          + 2 * EMBED_DIM * FLAT_PAD + FLAT_PAD
                          + FLAT_PAD * EMBED_DIM + EMBED_DIM
                          + BATCH * NUM_ENT)
    vmem = pltpu.MemorySpace.VMEM
    return pl.pallas_call(
        hran_convd_kernel,
        out_shape=jax.ShapeDtypeStruct((BATCH, NUM_ENT), jnp.float32),
        in_specs=[pl.BlockSpec(memory_space=vmem)] * 10,
        out_specs=pl.BlockSpec(memory_space=vmem),
        cost_estimate=pl.CostEstimate(flops=flops,
                                      transcendentals=BATCH * NUM_ENT,
                                      bytes_accessed=bytes_accessed),
    )(sub_idx, rel_idx, all_ent, init_rel, ent_t, W1s, W1r, b1, W2, b2)


# ------------------------------ reference (pure JAX) --------------------------
def reference_forward(sub, rel, init_embed, init_rel, conv_w, conv_b, fc_w, fc_b):
    s = 1.0 / np.sqrt(1.0 + BN_EPS)
    all_ent = init_embed
    stk = jnp.stack([all_ent[sub], init_rel[rel]], axis=1)          # (B, 2, D)
    x = stk * s                                                     # bn0
    out = jax.lax.conv_general_dilated(
        x, conv_w, window_strides=(1,), padding="VALID",
        dimension_numbers=("NCH", "OIH", "NCH"))                    # (B, F, W)
    out = out + conv_b[None, :, None]
    out = jnp.maximum(out * s, 0.0)                                 # bn1 + relu
    flat = out.reshape(BATCH, FLAT_SZ)                              # f*W + w
    y = flat @ fc_w.T + fc_b
    y = jnp.maximum(y * s, 0.0)                                     # bn2 + relu
    return jax.nn.sigmoid(y @ all_ent.T)


# ----------------------------------- main -------------------------------------
if __name__ == "__main__":
    key = jax.random.PRNGKey(0)
    k = jax.random.split(key, 8)

    init_embed = jax.random.normal(k[0], (NUM_ENT, EMBED_DIM), jnp.float32) * 0.1
    init_rel   = jax.random.normal(k[1], (NUM_REL2, EMBED_DIM), jnp.float32) * 0.1
    conv_w     = jax.random.normal(k[2], (NUM_FILT, 2, KER_SZ), jnp.float32) * 0.2
    conv_b     = jax.random.normal(k[3], (NUM_FILT,), jnp.float32) * 0.1
    fc_w       = jax.random.normal(k[4], (EMBED_DIM, FLAT_SZ), jnp.float32) * 0.05
    fc_b       = jax.random.normal(k[5], (EMBED_DIM,), jnp.float32) * 0.1

    sub = jax.random.randint(k[6], (BATCH,), 0, NUM_ENT, dtype=jnp.int32)
    rel = jax.random.randint(k[7], (BATCH,), 0, NUM_REL2, dtype=jnp.int32)

    # One-time parameter folding / re-layout (outside the per-call jit path).
    W1s, W1r, b1, W2, b2 = prepare_params(conv_w, conv_b, fc_w, fc_b)

    pred = hran_convd_forward(sub, rel, init_embed, init_rel,
                              W1s, W1r, b1, W2, b2)
    pred = jax.block_until_ready(pred)

    ref = reference_forward(sub, rel, init_embed, init_rel,
                            conv_w, conv_b, fc_w, fc_b)
    np.testing.assert_allclose(np.asarray(pred), np.asarray(ref),
                               rtol=1e-5, atol=1e-5)
    assert pred.shape == (BATCH, NUM_ENT)
    print("KERNEL_OK")
</pallas_src>

<mosaic_0001>
module attributes {stable_mosaic.version = 11 : i64} {
  func.func @hran_convd_kernel(%arg0: memref<4x1xi32, #tpu.memory_space<vmem>>, %arg1: memref<4x1xi32, #tpu.memory_space<vmem>>, %arg2: memref<256x32xf32, #tpu.memory_space<vmem>>, %arg3: memref<10x32xf32, #tpu.memory_space<vmem>>, %arg4: memref<32x256xf32, #tpu.memory_space<vmem>>, %arg5: memref<32x256xf32, #tpu.memory_space<vmem>>, %arg6: memref<32x256xf32, #tpu.memory_space<vmem>>, %arg7: memref<1x256xf32, #tpu.memory_space<vmem>>, %arg8: memref<256x32xf32, #tpu.memory_space<vmem>>, %arg9: memref<1x32xf32, #tpu.memory_space<vmem>>, %arg10: memref<4x256xf32, #tpu.memory_space<vmem>>) attributes {dimension_semantics = [], scalar_prefetch = 0 : i64, scratch_operands = 0 : i64, tpu.core_type = #tpu.core_type<tc>} {
    %c0 = arith.constant 0 : index
    %c0_0 = arith.constant 0 : index
    %0 = vector.load %arg0[%c0, %c0_0] : memref<4x1xi32, #tpu.memory_space<vmem>>, vector<4x1xi32>
    %c0_1 = arith.constant 0 : index
    %c0_2 = arith.constant 0 : index
    %1 = vector.load %arg1[%c0_1, %c0_2] : memref<4x1xi32, #tpu.memory_space<vmem>>, vector<4x1xi32>
    %2 = tpu.iota {dimensions = array<i32: 1>} : vector<4x256xi32>
    %3 = tpu.iota {dimensions = array<i32: 1>} : vector<4x10xi32>
    %4 = vector.broadcast %0 : vector<4x1xi32> to vector<4x256xi32>
    %5 = arith.cmpi eq, %2, %4 : vector<4x256xi32>
    %6 = arith.extui %5 : vector<4x256xi1> to vector<4x256xi32>
    %7 = arith.sitofp %6 : vector<4x256xi32> to vector<4x256xf32>
    %8 = vector.broadcast %1 : vector<4x1xi32> to vector<4x10xi32>
    %9 = arith.cmpi eq, %3, %8 : vector<4x10xi32>
    %10 = arith.extui %9 : vector<4x10xi1> to vector<4x10xi32>
    %11 = arith.sitofp %10 : vector<4x10xi32> to vector<4x10xf32>
    %c0_3 = arith.constant 0 : index
    %c0_4 = arith.constant 0 : index
    %12 = vector.load %arg2[%c0_3, %c0_4] : memref<256x32xf32, #tpu.memory_space<vmem>>, vector<256x32xf32>
    %cst = arith.constant dense<0.000000e+00> : vector<4x32xf32>
    %13 = tpu.matmul %7, %12, %cst {dimension_numbers = #tpu.dot_dimension_numbers<[1], [0], [0], [1], [0, 0, 1, 1], [], []>} : vector<4x256xf32>, vector<256x32xf32>, vector<4x32xf32> -> vector<4x32xf32>
    %c0_5 = arith.constant 0 : index
    %c0_6 = arith.constant 0 : index
    %14 = vector.load %arg3[%c0_5, %c0_6] : memref<10x32xf32, #tpu.memory_space<vmem>>, vector<10x32xf32>
    %cst_7 = arith.constant dense<0.000000e+00> : vector<4x32xf32>
    %15 = tpu.matmul %11, %14, %cst_7 {dimension_numbers = #tpu.dot_dimension_numbers<[1], [0], [0], [1], [0, 0, 1, 1], [], []>} : vector<4x10xf32>, vector<10x32xf32>, vector<4x32xf32> -> vector<4x32xf32>
    %c0_8 = arith.constant 0 : index
    %c0_9 = arith.constant 0 : index
    %16 = vector.load %arg5[%c0_8, %c0_9] : memref<32x256xf32, #tpu.memory_space<vmem>>, vector<32x256xf32>
    %cst_10 = arith.constant dense<0.000000e+00> : vector<4x256xf32>
    %17 = tpu.matmul %13, %16, %cst_10 {dimension_numbers = #tpu.dot_dimension_numbers<[1], [0], [0], [1], [0, 0, 1, 1], [], []>} : vector<4x32xf32>, vector<32x256xf32>, vector<4x256xf32> -> vector<4x256xf32>
    %c0_11 = arith.constant 0 : index
    %c0_12 = arith.constant 0 : index
    %18 = vector.load %arg6[%c0_11, %c0_12] : memref<32x256xf32, #tpu.memory_space<vmem>>, vector<32x256xf32>
    %cst_13 = arith.constant dense<0.000000e+00> : vector<4x256xf32>
    %19 = tpu.matmul %15, %18, %cst_13 {dimension_numbers = #tpu.dot_dimension_numbers<[1], [0], [0], [1], [0, 0, 1, 1], [], []>} : vector<4x32xf32>, vector<32x256xf32>, vector<4x256xf32> -> vector<4x256xf32>
    %20 = arith.addf %17, %19 : vector<4x256xf32>
    %c0_14 = arith.constant 0 : index
    %c0_15 = arith.constant 0 : index
    %21 = vector.load %arg7[%c0_14, %c0_15] : memref<1x256xf32, #tpu.memory_space<vmem>>, vector<1x256xf32>
    %22 = vector.broadcast %21 : vector<1x256xf32> to vector<4x256xf32>
    %23 = arith.addf %20, %22 : vector<4x256xf32>
    %cst_16 = arith.constant 0.000000e+00 : f32
    %24 = vector.broadcast %cst_16 : f32 to vector<4x256xf32>
    %25 = arith.maximumf %23, %24 : vector<4x256xf32>
    %c0_17 = arith.constant 0 : index
    %c0_18 = arith.constant 0 : index
    %26 = vector.load %arg8[%c0_17, %c0_18] : memref<256x32xf32, #tpu.memory_space<vmem>>, vector<256x32xf32>
    %cst_19 = arith.constant dense<0.000000e+00> : vector<4x32xf32>
    %27 = tpu.matmul %25, %26, %cst_19 {dimension_numbers = #tpu.dot_dimension_numbers<[1], [0], [0], [1], [0, 0, 1, 1], [], []>} : vector<4x256xf32>, vector<256x32xf32>, vector<4x32xf32> -> vector<4x32xf32>
    %c0_20 = arith.constant 0 : index
    %c0_21 = arith.constant 0 : index
    %28 = vector.load %arg9[%c0_20, %c0_21] : memref<1x32xf32, #tpu.memory_space<vmem>>, vector<1x32xf32>
    %29 = vector.broadcast %28 : vector<1x32xf32> to vector<4x32xf32>
    %30 = arith.addf %27, %29 : vector<4x32xf32>
    %cst_22 = arith.constant 0.000000e+00 : f32
    %31 = vector.broadcast %cst_22 : f32 to vector<4x32xf32>
    %32 = arith.maximumf %30, %31 : vector<4x32xf32>
    %c0_23 = arith.constant 0 : index
    %c0_24 = arith.constant 0 : index
    %33 = vector.load %arg4[%c0_23, %c0_24] : memref<32x256xf32, #tpu.memory_space<vmem>>, vector<32x256xf32>
    %cst_25 = arith.constant dense<0.000000e+00> : vector<4x256xf32>
    %34 = tpu.matmul %32, %33, %cst_25 {dimension_numbers = #tpu.dot_dimension_numbers<[1], [0], [0], [1], [0, 0, 1, 1], [], []>} : vector<4x32xf32>, vector<32x256xf32>, vector<4x256xf32> -> vector<4x256xf32>
    %35 = arith.negf %34 : vector<4x256xf32>
    %36 = math.exp %35 : vector<4x256xf32>
    %cst_26 = arith.constant 1.000000e+00 : f32
    %37 = vector.broadcast %cst_26 : f32 to vector<4x256xf32>
    %38 = arith.addf %37, %36 : vector<4x256xf32>
    %39 = arith.divf %37, %38 : vector<4x256xf32>
    %c0_27 = arith.constant 0 : index
    %c0_28 = arith.constant 0 : index
    %40 = vector.load %arg10[%c0_27, %c0_28] : memref<4x256xf32, #tpu.memory_space<vmem>>, vector<4x256xf32>
    tpu.vector_store %arg10[%c0_27, %c0_28], %39 {strides = array<i32>} : memref<4x256xf32, #tpu.memory_space<vmem>>, vector<4x256xf32>,
    return
  }
}

</mosaic_0001>

<llo_original>
// kernel: hran_convd_forward.1
$region0: #{hran_convd_forward.1}
  #allocation0 [shape = 'u32[]', space=smem, size = 0x4, offset = 0x4, fixed_abs, tag = 'smem constant byte address 0x4 - core index']
  #allocation1 [shape = 'u32[72,128]{1,0:T(1,128)}', space=vmem, size = 0x9000, scoped, tag = 'internal scratch']
  %s0 = inlined_call_operand.vmem [shape: s32[4,1], index: 0, kind: input, shape index: {}]
  %s1 = inlined_call_operand.vmem [shape: s32[4,1], index: 1, kind: input, shape index: {}]
  %s2 = inlined_call_operand.vmem [shape: f32[256,32], index: 2, kind: input, shape index: {}]
  %s3 = inlined_call_operand.vmem [shape: f32[10,32], index: 3, kind: input, shape index: {}]
  %s4 = inlined_call_operand.vmem [shape: f32[32,256], index: 4, kind: input, shape index: {}]
  %s5 = inlined_call_operand.vmem [shape: f32[32,256], index: 5, kind: input, shape index: {}]
  %s6 = inlined_call_operand.vmem [shape: f32[32,256], index: 6, kind: input, shape index: {}]
  %s7 = inlined_call_operand.vmem [shape: f32[1,256], index: 7, kind: input, shape index: {}]
  %s8 = inlined_call_operand.vmem [shape: f32[256,32], index: 8, kind: input, shape index: {}]
  %s9 = inlined_call_operand.vmem [shape: f32[1,32], index: 9, kind: input, shape index: {}]
  %s10 = inlined_call_operand.hbm [shape: f32[4,256], index: 10, kind: output, shape index: {}]
  %s11 = sld [smem:[#allocation0]]
  $region50: #{hran_convd_forward.1} parent=0
    _
  %s13 = ssub.s32 1, %s11
  %s14 = scalar_select 0, %s13, %s11
  $region1: #{hran_convd_forward.1} parent=0
    #allocation2 [shape = 'u8[4096]{0}', space=vmem, size = 0x1000, scoped, tag = 'output window, operand 0, single buffered']
    #allocation3 [shape = 's32[1]{0}', space=sflag, size = 0x4, scoped, tag = 'scoped memory for hran_convd_forward.1']
    %15 = vsyncpa [#allocation3], 0
    // Predicated region
    $region2: #{hran_convd_forward.1} parent=1 // pred_check
      _
    $region3: #{hran_convd_forward.1} parent=1 // pred_check_branch
      %17 = sbr.rel (0) target = $region5
    $region4: #{hran_convd_forward.1} parent=1 // pred_region
      _
    $region5: #{hran_convd_forward.1} parent=1 // pred_fallthru
      _
    // Predicated region
    $region6: #{hran_convd_forward.1} parent=1 // pred_check
      _
    $region7: #{hran_convd_forward.1} parent=1 // pred_check_branch
      %19 = sbr.rel (0) target = $region9
    $region8: #{hran_convd_forward.1} parent=1 // pred_region
      _
    $region9: #{hran_convd_forward.1} parent=1 // pred_fallthru
      _
    // Predicated region
    $region10: #{hran_convd_forward.1} parent=1 // pred_check
      _
    $region11: #{hran_convd_forward.1} parent=1 // pred_check_branch
      %21 = sbr.rel (0) target = $region13
    $region12: #{hran_convd_forward.1} parent=1 // pred_region
      _
    $region13: #{hran_convd_forward.1} parent=1 // pred_fallthru
      _
    // Predicated region
    $region14: #{hran_convd_forward.1} parent=1 // pred_check
      _
    $region15: #{hran_convd_forward.1} parent=1 // pred_check_branch
      %23 = sbr.rel (0) target = $region17
    $region16: #{hran_convd_forward.1} parent=1 // pred_region
      _
    $region17: #{hran_convd_forward.1} parent=1 // pred_fallthru
      _
    // Predicated region
    $region18: #{hran_convd_forward.1} parent=1 // pred_check
      _
    $region19: #{hran_convd_forward.1} parent=1 // pred_check_branch
      %25 = sbr.rel (0) target = $region21
    $region20: #{hran_convd_forward.1} parent=1 // pred_region
      _
    $region21: #{hran_convd_forward.1} parent=1 // pred_fallthru
      _
    // Predicated region
    $region22: #{hran_convd_forward.1} parent=1 // pred_check
      _
    $region23: #{hran_convd_forward.1} parent=1 // pred_check_branch
      %27 = sbr.rel (0) target = $region25
    $region24: #{hran_convd_forward.1} parent=1 // pred_region
      _
    $region25: #{hran_convd_forward.1} parent=1 // pred_fallthru
      _
    // Predicated region
    $region26: #{hran_convd_forward.1} parent=1 // pred_check
      _
    $region27: #{hran_convd_forward.1} parent=1 // pred_check_branch
      %29 = sbr.rel (0) target = $region29
    $region28: #{hran_convd_forward.1} parent=1 // pred_region
      _
    $region29: #{hran_convd_forward.1} parent=1 // pred_fallthru
      _
    // Predicated region
    $region30: #{hran_convd_forward.1} parent=1 // pred_check
      _
    $region31: #{hran_convd_forward.1} parent=1 // pred_check_branch
      %31 = sbr.rel (0) target = $region33
    $region32: #{hran_convd_forward.1} parent=1 // pred_region
      _
    $region33: #{hran_convd_forward.1} parent=1 // pred_fallthru
      _
    // Predicated region
    $region34: #{hran_convd_forward.1} parent=1 // pred_check
      _
    $region35: #{hran_convd_forward.1} parent=1 // pred_check_branch
      %33 = sbr.rel (0) target = $region37
    $region36: #{hran_convd_forward.1} parent=1 // pred_region
      _
    $region37: #{hran_convd_forward.1} parent=1 // pred_fallthru
      _
    // Predicated region
    $region38: #{hran_convd_forward.1} parent=1 // pred_check
      _
    $region39: #{hran_convd_forward.1} parent=1 // pred_check_branch
      %35 = sbr.rel (0) target = $region41
    $region40: #{hran_convd_forward.1} parent=1 // pred_region
      _
    $region41: #{hran_convd_forward.1} parent=1 // pred_fallthru
      _
    %v36 = vld [vmem:[%s0] sm:$0xf]
    %v37 = vld [vmem:[%s1] sm:$0xf]
    %v38 = vlaneseq
    %v39 = vand.u32 %v38, 127
    %v40 = vadd.s32 %v39, 128
    %41 = vset.pattern.permute.xlu0 0
    %42 = vperm.xlu0 %41, %v36
    %v43 = vpop.permute.xlu0 %42
    %vm44 = vcmp.eq.s32.totalorder %v39, %v43
    %vm45 = vcmp.eq.s32.totalorder %v40, %v43
    %v46 = vsel %vm44, 1, 0
    %v47 = vsel %vm45, 1, 0
    %v48 = vcvt.s32.f32 %v46
    %v49 = vcvt.s32.f32 %v47
    %50 = vset.pattern.permute.xlu0 0
    %51 = vperm.xlu0 %50, %v37
    %v52 = vpop.permute.xlu0 %51
    %vm53 = vcmp.eq.s32.totalorder %v39, %v52
    %v54 = vsel %vm53, 1, 0
    %v55 = vcvt.s32.f32 %v54
    %v56 = vld [vmem:[%s2] sm:$0xff]
    %v57 = vld [vmem:[%s2 + $0x8] sm:$0xff]
    %v58 = vld [vmem:[%s2 + $0x10] sm:$0xff]
    %v59 = vld [vmem:[%s2 + $0x18] sm:$0xff]
    %v60 = vld [vmem:[%s2 + $0x20] sm:$0xff]
    %v61 = vld [vmem:[%s2 + $0x28] sm:$0xff]
    %v62 = vld [vmem:[%s2 + $0x30] sm:$0xff]
    %v63 = vld [vmem:[%s2 + $0x38] sm:$0xff]
    %v64 = vld [vmem:[%s2 + $0x40] sm:$0xff]
    %v65 = vld [vmem:[%s2 + $0x48] sm:$0xff]
    %v66 = vld [vmem:[%s2 + $0x50] sm:$0xff]
    %v67 = vld [vmem:[%s2 + $0x58] sm:$0xff]
    %v68 = vld [vmem:[%s2 + $0x60] sm:$0xff]
    %v69 = vld [vmem:[%s2 + $0x68] sm:$0xff]
    %v70 = vld [vmem:[%s2 + $0x70] sm:$0xff]
    %v71 = vld [vmem:[%s2 + $0x78] sm:$0xff]
    %v72 = vld [vmem:[%s2 + $0x80] sm:$0xff]
    %v73 = vld [vmem:[%s2 + $0x88] sm:$0xff]
    %v74 = vld [vmem:[%s2 + $0x90] sm:$0xff]
    %v75 = vld [vmem:[%s2 + $0x98] sm:$0xff]
    %v76 = vld [vmem:[%s2 + $0xa0] sm:$0xff]
    %v77 = vld [vmem:[%s2 + $0xa8] sm:$0xff]
    %v78 = vld [vmem:[%s2 + $0xb0] sm:$0xff]
    %v79 = vld [vmem:[%s2 + $0xb8] sm:$0xff]
    %v80 = vld [vmem:[%s2 + $0xc0] sm:$0xff]
    %v81 = vld [vmem:[%s2 + $0xc8] sm:$0xff]
    %v82 = vld [vmem:[%s2 + $0xd0] sm:$0xff]
    %v83 = vld [vmem:[%s2 + $0xd8] sm:$0xff]
    %v84 = vld [vmem:[%s2 + $0xe0] sm:$0xff]
    %v85 = vld [vmem:[%s2 + $0xe8] sm:$0xff]
    %v86 = vld [vmem:[%s2 + $0xf0] sm:$0xff]
    %v87 = vld [vmem:[%s2 + $0xf8] sm:$0xff]
    %88 = vmatpush.msra.mxu0 %v71
    %89 = vmatpush.msra.mxu0 %v70
    %90 = vmatpush.msra.mxu0 %v69
    %91 = vmatpush.msra.mxu0 %v68
    %92 = vmatpush.msra.mxu0 %v67
    %93 = vmatpush.msra.mxu0 %v66
    %94 = vmatpush.msra.mxu0 %v65
    %95 = vmatpush.msra.mxu0 %v64
    %96 = vmatpush.msra.mxu0 %v63
    %97 = vmatpush.msra.mxu0 %v62
    %98 = vmatpush.msra.mxu0 %v61
    %99 = vmatpush.msra.mxu0 %v60
    %100 = vmatpush.msra.mxu0 %v59
    %101 = vmatpush.msra.mxu0 %v58
    %102 = vmatpush.msra.mxu0 %v57
    %103 = vmatpush.msra.mxu0 %v56
    %104 = vmatmul.f32.gmra.mxu0 %v48
    %v105 = vpop.f32.mrf.mxu0
    %v106 = vadd.f32 0.0, %v105
    %107 = vdwg.mxu0
    %108 = vmatpush.msra.mxu0 %v87
    %109 = vmatpush.msra.mxu0 %v86
    %110 = vmatpush.msra.mxu0 %v85
    %111 = vmatpush.msra.mxu0 %v84
    %112 = vmatpush.msra.mxu0 %v83
    %113 = vmatpush.msra.mxu0 %v82
    %114 = vmatpush.msra.mxu0 %v81
    %115 = vmatpush.msra.mxu0 %v80
    %116 = vmatpush.msra.mxu0 %v79
    %117 = vmatpush.msra.mxu0 %v78
    %118 = vmatpush.msra.mxu0 %v77
    %119 = vmatpush.msra.mxu0 %v76
    %120 = vmatpush.msra.mxu0 %v75
    %121 = vmatpush.msra.mxu0 %v74
    %122 = vmatpush.msra.mxu0 %v73
    %123 = vmatpush.msra.mxu0 %v72
    %124 = vmatmul.f32.gmra.mxu0 %v49
    %v125 = vpop.f32.mrf.mxu0
    %v126 = vadd.f32 %v106, %v125
    %127 = vdwg.mxu0
    %v128 = vld [vmem:[%s3] sm:$0xff]
    %v129 = vld [vmem:[%s3 + $0x8] sm:$0x3]
    %vm130 = vcmask 80896
    %v132 = vsel %vm130, %v55, 0
    %vm134 = vcmask 1041408
    %v136 = vsel %vm134, %v129, 0
    %138 = vmatpush.msra.mxu0 0.0
    %139 = vmatpush.msra.mxu0 0.0
    %140 = vmatpush.msra.mxu0 0.0
    %141 = vmatpush.msra.mxu0 0.0
    %142 = vmatpush.msra.mxu0 0.0
    %143 = vmatpush.msra.mxu0 0.0
    %144 = vmatpush.msra.mxu0 0.0
    %145 = vmatpush.msra.mxu0 0.0
    %146 = vmatpush.msra.mxu0 0.0
    %147 = vmatpush.msra.mxu0 0.0
    %148 = vmatpush.msra.mxu0 0.0
    %149 = vmatpush.msra.mxu0 0.0
    %150 = vmatpush.msra.mxu0 0.0
    %151 = vmatpush.msra.mxu0 0.0
    %152 = vmatpush.msra.mxu0 %v136
    %153 = vmatpush.msra.mxu0 %v128
    %154 = vmatmul.f32.gmra.mxu0 %v132
    %v155 = vpop.f32.mrf.mxu0
    %v156 = vadd.f32 0.0, %v155
    %157 = vdwg.mxu0
    %v158 = vld [vmem:[%s5] sm:$0xff]
    %v159 = vld [vmem:[%s5 + $0x8] sm:$0xff]
    %v160 = vld [vmem:[%s5 + $0x10] sm:$0xff]
    %v161 = vld [vmem:[%s5 + $0x18] sm:$0xff]
    %v162 = vld [vmem:[%s5 + $0x20] sm:$0xff]
    %v163 = vld [vmem:[%s5 + $0x28] sm:$0xff]
    %v164 = vld [vmem:[%s5 + $0x30] sm:$0xff]
    %v165 = vld [vmem:[%s5 + $0x38] sm:$0xff]
    %v166 = vld [vmem:[%s6] sm:$0xff]
    %v167 = vld [vmem:[%s6 + $0x8] sm:$0xff]
    %v168 = vld [vmem:[%s6 + $0x10] sm:$0xff]
    %v169 = vld [vmem:[%s6 + $0x18] sm:$0xff]
    %v170 = vld [vmem:[%s6 + $0x20] sm:$0xff]
    %v171 = vld [vmem:[%s6 + $0x28] sm:$0xff]
    %v172 = vld [vmem:[%s6 + $0x30] sm:$0xff]
    %v173 = vld [vmem:[%s6 + $0x38] sm:$0xff]
    %vm174 = vcmask 261120
    %v176 = vsel %vm174, %v156, 0
    %178 = vmatpush.msra.mxu0 0.0
    %179 = vmatpush.msra.mxu0 0.0
    %180 = vmatpush.msra.mxu0 0.0
    %181 = vmatpush.msra.mxu0 0.0
    %182 = vmatpush.msra.mxu0 0.0
    %183 = vmatpush.msra.mxu0 0.0
    %184 = vmatpush.msra.mxu0 0.0
    %185 = vmatpush.msra.mxu0 0.0
    %186 = vmatpush.msra.mxu0 0.0
    %187 = vmatpush.msra.mxu0 0.0
    %188 = vmatpush.msra.mxu0 0.0
    %189 = vmatpush.msra.mxu0 0.0
    %190 = vmatpush.msra.mxu0 %v172
    %191 = vmatpush.msra.mxu0 %v170
    %192 = vmatpush.msra.mxu0 %v168
    %193 = vmatpush.msra.mxu0 %v166
    %194 = vmatmul.f32.gmra.mxu0 %v176
    %v195 = vpop.f32.mrf.mxu0
    %v196 = vadd.f32 0.0, %v195
    %197 = vdwg.mxu0
    %198 = vmatpush.msra.mxu0 0.0
    %199 = vmatpush.msra.mxu0 0.0
    %200 = vmatpush.msra.mxu0 0.0
    %201 = vmatpush.msra.mxu0 0.0
    %202 = vmatpush.msra.mxu0 0.0
    %203 = vmatpush.msra.mxu0 0.0
    %204 = vmatpush.msra.mxu0 0.0
    %205 = vmatpush.msra.mxu0 0.0
    %206 = vmatpush.msra.mxu0 0.0
    %207 = vmatpush.msra.mxu0 0.0
    %208 = vmatpush.msra.mxu0 0.0
    %209 = vmatpush.msra.mxu0 0.0
    %210 = vmatpush.msra.mxu0 %v173
    %211 = vmatpush.msra.mxu0 %v171
    %212 = vmatpush.msra.mxu0 %v169
    %213 = vmatpush.msra.mxu0 %v167
    %214 = vmatmul.f32.gmra.mxu0 %v176
    %v215 = vpop.f32.mrf.mxu0
    %v216 = vadd.f32 0.0, %v215
    %217 = vdwg.mxu0
    %v219 = vsel %vm174, %v126, 0
    %221 = vmatpush.msra.mxu0 0.0
    %222 = vmatpush.msra.mxu0 0.0
    %223 = vmatpush.msra.mxu0 0.0
    %224 = vmatpush.msra.mxu0 0.0
    %225 = vmatpush.msra.mxu0 0.0
    %226 = vmatpush.msra.mxu0 0.0
    %227 = vmatpush.msra.mxu0 0.0
    %228 = vmatpush.msra.mxu0 0.0
    %229 = vmatpush.msra.mxu0 0.0
    %230 = vmatpush.msra.mxu0 0.0
    %231 = vmatpush.msra.mxu0 0.0
    %232 = vmatpush.msra.mxu0 0.0
    %233 = vmatpush.msra.mxu0 %v164
    %234 = vmatpush.msra.mxu0 %v162
    %235 = vmatpush.msra.mxu0 %v160
    %236 = vmatpush.msra.mxu0 %v158
    %237 = vmatmul.f32.gmra.mxu0 %v219
    %v238 = vpop.f32.mrf.mxu0
    %v239 = vadd.f32 %v196, %v238
    %240 = vdwg.mxu0
    %241 = vmatpush.msra.mxu0 0.0
    %242 = vmatpush.msra.mxu0 0.0
    %243 = vmatpush.msra.mxu0 0.0
    %244 = vmatpush.msra.mxu0 0.0
    %245 = vmatpush.msra.mxu0 0.0
    %246 = vmatpush.msra.mxu0 0.0
    %247 = vmatpush.msra.mxu0 0.0
    %248 = vmatpush.msra.mxu0 0.0
    %249 = vmatpush.msra.mxu0 0.0
    %250 = vmatpush.msra.mxu0 0.0
    %251 = vmatpush.msra.mxu0 0.0
    %252 = vmatpush.msra.mxu0 0.0
    %253 = vmatpush.msra.mxu0 %v165
    %254 = vmatpush.msra.mxu0 %v163
    %255 = vmatpush.msra.mxu0 %v161
    %256 = vmatpush.msra.mxu0 %v159
    %257 = vmatmul.f32.gmra.mxu0 %v219
    %v258 = vpop.f32.mrf.mxu0
    %v259 = vadd.f32 %v216, %v258
    %260 = vdwg.mxu0
    %v261 = vld [vmem:[%s7] sm:$0x3]
    %v263 = vperm.slane %v261, 0
    %v264 = vperm.slane %v261, 1
    %v267 = vadd.f32 %v239, %v263
    %v268 = vadd.f32 %v259, %v264
    %v269 = vmax.f32 %v267, 0.0
    %v270 = vmax.f32 %v268, 0.0
    %v271 = vld [vmem:[%s8] sm:$0xff]
    %v272 = vld [vmem:[%s8 + $0x8] sm:$0xff]
    %v273 = vld [vmem:[%s8 + $0x10] sm:$0xff]
    %v274 = vld [vmem:[%s8 + $0x18] sm:$0xff]
    %v275 = vld [vmem:[%s8 + $0x20] sm:$0xff]
    %v276 = vld [vmem:[%s8 + $0x28] sm:$0xff]
    %v277 = vld [vmem:[%s8 + $0x30] sm:$0xff]
    %v278 = vld [vmem:[%s8 + $0x38] sm:$0xff]
    %v279 = vld [vmem:[%s8 + $0x40] sm:$0xff]
    %v280 = vld [vmem:[%s8 + $0x48] sm:$0xff]
    %v281 = vld [vmem:[%s8 + $0x50] sm:$0xff]
    %v282 = vld [vmem:[%s8 + $0x58] sm:$0xff]
    %v283 = vld [vmem:[%s8 + $0x60] sm:$0xff]
    %v284 = vld [vmem:[%s8 + $0x68] sm:$0xff]
    %v285 = vld [vmem:[%s8 + $0x70] sm:$0xff]
    %v286 = vld [vmem:[%s8 + $0x78] sm:$0xff]
    %v287 = vld [vmem:[%s8 + $0x80] sm:$0xff]
    %v288 = vld [vmem:[%s8 + $0x88] sm:$0xff]
    %v289 = vld [vmem:[%s8 + $0x90] sm:$0xff]
    %v290 = vld [vmem:[%s8 + $0x98] sm:$0xff]
    %v291 = vld [vmem:[%s8 + $0xa0] sm:$0xff]
    %v292 = vld [vmem:[%s8 + $0xa8] sm:$0xff]
    %v293 = vld [vmem:[%s8 + $0xb0] sm:$0xff]
    %v294 = vld [vmem:[%s8 + $0xb8] sm:$0xff]
    %v295 = vld [vmem:[%s8 + $0xc0] sm:$0xff]
    %v296 = vld [vmem:[%s8 + $0xc8] sm:$0xff]
    %v297 = vld [vmem:[%s8 + $0xd0] sm:$0xff]
    %v298 = vld [vmem:[%s8 + $0xd8] sm:$0xff]
    %v299 = vld [vmem:[%s8 + $0xe0] sm:$0xff]
    %v300 = vld [vmem:[%s8 + $0xe8] sm:$0xff]
    %v301 = vld [vmem:[%s8 + $0xf0] sm:$0xff]
    %v302 = vld [vmem:[%s8 + $0xf8] sm:$0xff]
    %v303 = vld [vmem:[%s9] sm:$0x1]
    %v305 = vperm.slane %v303, 0
    %307 = vmatpush.msra.mxu0 %v286
    %308 = vmatpush.msra.mxu0 %v285
    %309 = vmatpush.msra.mxu0 %v284
    %310 = vmatpush.msra.mxu0 %v283
    %311 = vmatpush.msra.mxu0 %v282
    %312 = vmatpush.msra.mxu0 %v281
    %313 = vmatpush.msra.mxu0 %v280
    %314 = vmatpush.msra.mxu0 %v279
    %315 = vmatpush.msra.mxu0 %v278
    %316 = vmatpush.msra.mxu0 %v277
    %317 = vmatpush.msra.mxu0 %v276
    %318 = vmatpush.msra.mxu0 %v275
    %319 = vmatpush.msra.mxu0 %v274
    %320 = vmatpush.msra.mxu0 %v273
    %321 = vmatpush.msra.mxu0 %v272
    %322 = vmatpush.msra.mxu0 %v271
    %323 = vmatmul.f32.gmra.mxu0 %v269
    %v324 = vpop.f32.mrf.mxu0
    %v325 = vadd.f32 %v305, %v324
    %326 = vdwg.mxu0
    %327 = vmatpush.msra.mxu0 %v302
    %328 = vmatpush.msra.mxu0 %v301
    %329 = vmatpush.msra.mxu0 %v300
    %330 = vmatpush.msra.mxu0 %v299
    %331 = vmatpush.msra.mxu0 %v298
    %332 = vmatpush.msra.mxu0 %v297
    %333 = vmatpush.msra.mxu0 %v296
    %334 = vmatpush.msra.mxu0 %v295
    %335 = vmatpush.msra.mxu0 %v294
    %336 = vmatpush.msra.mxu0 %v293
    %337 = vmatpush.msra.mxu0 %v292
    %338 = vmatpush.msra.mxu0 %v291
    %339 = vmatpush.msra.mxu0 %v290
    %340 = vmatpush.msra.mxu0 %v289
    %341 = vmatpush.msra.mxu0 %v288
    %342 = vmatpush.msra.mxu0 %v287
    %343 = vmatmul.f32.gmra.mxu0 %v270
    %v344 = vpop.f32.mrf.mxu0
    %v345 = vadd.f32 %v325, %v344
    %346 = vdwg.mxu0
    %v347 = vmax.f32 %v345, 0.0
    %v348 = vld [vmem:[%s4] sm:$0xff]
    %v349 = vld [vmem:[%s4 + $0x8] sm:$0xff]
    %v350 = vld [vmem:[%s4 + $0x10] sm:$0xff]
    %v351 = vld [vmem:[%s4 + $0x18] sm:$0xff]
    %v352 = vld [vmem:[%s4 + $0x20] sm:$0xff]
    %v353 = vld [vmem:[%s4 + $0x28] sm:$0xff]
    %v354 = vld [vmem:[%s4 + $0x30] sm:$0xff]
    %v355 = vld [vmem:[%s4 + $0x38] sm:$0xff]
    %v357 = vsel %vm174, %v347, 0
    %359 = vmatpush.msra.mxu0 0.0
    %360 = vmatpush.msra.mxu0 0.0
    %361 = vmatpush.msra.mxu0 0.0
    %362 = vmatpush.msra.mxu0 0.0
    %363 = vmatpush.msra.mxu0 0.0
    %364 = vmatpush.msra.mxu0 0.0
    %365 = vmatpush.msra.mxu0 0.0
    %366 = vmatpush.msra.mxu0 0.0
    %367 = vmatpush.msra.mxu0 0.0
    %368 = vmatpush.msra.mxu0 0.0
    %369 = vmatpush.msra.mxu0 0.0
    %370 = vmatpush.msra.mxu0 0.0
    %371 = vmatpush.msra.mxu0 %v354
    %372 = vmatpush.msra.mxu0 %v352
    %373 = vmatpush.msra.mxu0 %v350
    %374 = vmatpush.msra.mxu0 %v348
    %375 = vmatmul.f32.gmra.mxu0 %v357
    %v376 = vpop.f32.mrf.mxu0
    %v377 = vadd.f32 0.0, %v376
    %378 = vdwg.mxu0
    %379 = vmatpush.msra.mxu0 0.0
    %380 = vmatpush.msra.mxu0 0.0
    %381 = vmatpush.msra.mxu0 0.0
    %382 = vmatpush.msra.mxu0 0.0
    %383 = vmatpush.msra.mxu0 0.0
    %384 = vmatpush.msra.mxu0 0.0
    %385 = vmatpush.msra.mxu0 0.0
    %386 = vmatpush.msra.mxu0 0.0
    %387 = vmatpush.msra.mxu0 0.0
    %388 = vmatpush.msra.mxu0 0.0
    %389 = vmatpush.msra.mxu0 0.0
    %390 = vmatpush.msra.mxu0 0.0
    %391 = vmatpush.msra.mxu0 %v355
    %392 = vmatpush.msra.mxu0 %v353
    %393 = vmatpush.msra.mxu0 %v351
    %394 = vmatpush.msra.mxu0 %v349
    %395 = vmatmul.f32.gmra.mxu0 %v357
    %v396 = vpop.f32.mrf.mxu0
    %v397 = vadd.f32 0.0, %v396
    %398 = vdwg.mxu0
    %v399 = vxor.u32 %v377, 2147483648
    %v400 = vxor.u32 %v397, 2147483648
    %v401 = vmul.f32 %v399, 1.442695
    %v402 = vpow.pop %v401
    %v403 = vmul.f32 %v400, 1.442695
    %v404 = vpow.pop %v403
    %v405 = vadd.f32 %v402, 1.0
    %v406 = vadd.f32 %v404, 1.0
    %v407 = vrcp.pop %v405
    %v408 = vmul.f32 %v405, %v407
    %v409 = vsub.f32 1.0, %v408
    %v410 = vmul.f32 %v407, %v409
    %v411 = vadd.f32 %v407, %v410
    %vm412 = vweird.f32 %v405
    %vm413 = vweird.f32 %v407
    %vm414 = vmor %vm412, %vm413
    %v415 = vsel %vm414, %v407, %v411
    %v416 = vand.u32 2147483647, %v405
    %vm417 = vcmp.eq.f32.partialorder %v416, 8.507059e+37
    %v418 = vand.u32 %v405, 2147483648
    %v419 = vor.u32 1.1754944e-38, %v418
    %v420 = vsel %vm417, %v419, %v415
    %v421 = vmul.f32 1.0, %v420
    %v422 = vrcp.pop %v406
    %v423 = vmul.f32 %v406, %v422
    %v424 = vsub.f32 1.0, %v423
    %v425 = vmul.f32 %v422, %v424
    %v426 = vadd.f32 %v422, %v425
    %vm427 = vweird.f32 %v406
    %vm428 = vweird.f32 %v422
    %vm429 = vmor %vm427, %vm428
    %v430 = vsel %vm429, %v422, %v426
    %v431 = vand.u32 2147483647, %v406
    %vm432 = vcmp.eq.f32.partialorder %v431, 8.507059e+37
    %v433 = vand.u32 %v406, 2147483648
    %v434 = vor.u32 1.1754944e-38, %v433
    %v435 = vsel %vm432, %v434, %v430
    %v436 = vmul.f32 1.0, %v435
    %v439 = vrot.slane %v436, 4
    %vm440 = vcmask 1043456
    %v441 = vsel %vm440, %v421, %v439
    %443 = vst [vmem:[#allocation2] sm:$0xff] %v441
    // Predicated region
    $region42: #{hran_convd_forward.1} parent=1 // pred_check
      _
    $region43: #{hran_convd_forward.1} parent=1 // pred_check_branch
      %445 = sbr.rel (0) target = $region45
    $region44: #{hran_convd_forward.1} parent=1 // pred_region
      %447 = vsyncadd [#allocation3], 0
      %s449 = sshll.u32 [#allocation2], 4
      %s450 = int_to_ptr.vmem [resolvable:$true] %s449
      %s451 = sshll.u32 %s10, 4
      %s452 = int_to_ptr.hbm [resolvable:$true] %s451
      %454 = dma.vmem_to_hbm [thread:$0]  %s450, 128, %s452, [#allocation3]
    $region45: #{hran_convd_forward.1} parent=1 // pred_fallthru
      _
    // Predicated region
    $region46: #{hran_convd_forward.1} parent=1 // pred_check
      _
    $region47: #{hran_convd_forward.1} parent=1 // pred_check_branch
      %456 = sbr.rel (0) target = $region49
    $region48: #{hran_convd_forward.1} parent=1 // pred_region
      %458 = dma.done [#allocation3], 128
    $region49: #{hran_convd_forward.1} parent=1 // pred_fallthru
      _
    %459 = vsyncpa [#allocation3], 1

</llo_original>
